<compile_context>
chip_gen: v7x
topology: tpu7x:2x2x1
jax: 0.10.0
libtpu: 0.0.40
codegen_flags: <defaults>
</compile_context>

<pallas_src>
import jax
import jax.numpy as jnp
from jax import lax
from jax.experimental import pallas as pl
from jax.experimental.pallas import tpu as pltpu

EPS = 1e-12
_VMEM_LIMIT = 32 * 1024 * 1024


def _round_up(x, m):
    return ((x + m - 1) // m) * m


def _pick_tile(dim, candidates):
    """Largest candidate that exactly divides `dim`, else the full dim."""
    for c in candidates:
        if dim % c == 0:
            return c
    return dim


def _pick_prologue_k_tile(K, N, itemsize, budget=8 * 1024 * 1024):
    """K-tile for the power iteration: largest 128-multiple divisor of K whose
    (N, tk) W tile stays under `budget` bytes; falls back to the smallest
    divisor, or to the full K for small/odd layers."""
    divs = [c for c in (512, 256, 128) if K % c == 0]
    if not divs:
        return K
    for c in divs:
        if N * c * itemsize <= budget:
            return c
    return divs[-1]


# ---------------------------------------------------------------------------
# Prologue: one power-iteration step -> inv_sigma, updated u.
# Grid over In-blocks; W streamed in native dtype, cast to f32 per tile.
# ---------------------------------------------------------------------------
def _power_iteration_kernel(u_ref, w_ref, inv_sigma_ref, u_new_ref,
                            wv_acc, vsq_acc):
    k = pl.program_id(0)

    @pl.when(k == 0)
    def _init():
        wv_acc[...] = jnp.zeros_like(wv_acc)
        vsq_acc[...] = jnp.zeros_like(vsq_acc)

    w_tile = w_ref[...].astype(jnp.float32)      # (Out, tk), cast per-tile
    u = u_ref[...].astype(jnp.float32)           # (1, Out)

    # v_raw block: contract over Out  -> (1, tk)
    v_blk = jnp.dot(u, w_tile, preferred_element_type=jnp.float32)
    vsq_acc[...] += jnp.sum(v_blk * v_blk, keepdims=True)

    # Partial W @ v_raw: contract over this In-block -> (1, Out)
    wv_acc[...] += lax.dot_general(v_blk, w_tile, (((1,), (1,)), ((), ())),
                                   preferred_element_type=jnp.float32)

    @pl.when(k == pl.num_programs(0) - 1)
    def _finalize():
        wv = wv_acc[...]                                           # (1, Out) = W v_raw
        wv_norm = jnp.sqrt(jnp.maximum(jnp.sum(wv * wv, keepdims=True),
                                       EPS * EPS))                 # (1, 1)
        v_norm = jnp.sqrt(jnp.maximum(vsq_acc[...], EPS * EPS))    # (1, 1)
        u_new_ref[...] = (wv / wv_norm).astype(u_new_ref.dtype)
        # sigma = ||W v|| with v = v_raw/||v_raw||  =>  inv_sigma = ||v_raw||/||W v_raw||
        inv_sigma_ref[...] = v_norm / wv_norm


def _power_iteration(w, u_row):
    out_features, in_features = w.shape
    tk = _pick_prologue_k_tile(in_features, out_features, w.dtype.itemsize)
    grid = (in_features // tk,)

    return pl.pallas_call(
        _power_iteration_kernel,
        out_shape=(jax.ShapeDtypeStruct((1, 1), jnp.float32),
                   jax.ShapeDtypeStruct((1, out_features), jnp.float32)),
        grid=grid,
        in_specs=[
            pl.BlockSpec((1, out_features), lambda k: (0, 0)),       # u (resident)
            pl.BlockSpec((out_features, tk), lambda k: (0, k)),      # W column tile
        ],
        out_specs=(pl.BlockSpec((1, 1), lambda k: (0, 0)),
                   pl.BlockSpec((1, out_features), lambda k: (0, 0))),
        scratch_shapes=[pltpu.VMEM((1, out_features), jnp.float32),
                        pltpu.VMEM((1, 1), jnp.float32)],
        compiler_params=pltpu.CompilerParams(
            dimension_semantics=("arbitrary",),
            vmem_limit_bytes=_VMEM_LIMIT,
        ),
    )(u_row, w)


# ---------------------------------------------------------------------------
# Hot path: tiled GEMM, y = (x @ W^T) * inv_sigma + b, W kept in (Out, In)
# layout and contracted in-kernel (no pre-transpose copy of W).
# ---------------------------------------------------------------------------
def _sn_matmul_kernel(x_ref, w_ref, b_ref, inv_sigma_ref, y_ref, acc_ref):
    k = pl.program_id(2)

    @pl.when(k == 0)
    def _init():
        acc_ref[...] = jnp.zeros_like(acc_ref)

    # k-loop body: pure MXU accumulate; (tm, tk) x (tn, tk) contracted over K.
    acc_ref[...] += lax.dot_general(x_ref[...], w_ref[...],
                                    (((1,), (1,)), ((), ())),
                                    preferred_element_type=jnp.float32)

    @pl.when(k == pl.num_programs(2) - 1)
    def _finalize():
        inv_sigma = inv_sigma_ref[0, 0]                    # SMEM scalar
        y_ref[...] = (acc_ref[...] * inv_sigma + b_ref[...]).astype(y_ref.dtype)


def spectral_norm_linear(x, w, b, u, *, compute_dtype=None):
    """y = x @ (W / sigma)^T + b  with sigma from one power-iteration step.

    Returns (y, u_new). PyTorch updates its `u` buffer in place each forward;
    the updated vector is returned here instead.
    """
    M, K = x.shape
    N, K_w = w.shape
    assert K == K_w

    # -- 1) sigma / updated u (cold path, tiled matvec prologue) --------------
    inv_sigma, u_new = _power_iteration(w, u.reshape(1, N).astype(jnp.float32))

    # -- 2) hot path: tiled, pipelined GEMM ------------------------------------
    # bf16 compute tiles (with the f32 accumulator) are the recommended setting
    # on v5e/v6e/v7x; default keeps the input dtype for strict f32 parity.
    dt = x.dtype if compute_dtype is None else jnp.dtype(compute_dtype)
    x_c = x if x.dtype == dt else x.astype(dt)
    # TODO(synk): store W in the compute dtype with the parameters to avoid this
    # one-time cast copy when compute_dtype != w.dtype.
    w_c = w if w.dtype == dt else w.astype(dt)
    b_row = b.reshape(1, N).astype(jnp.float32)

    # Batch axis: pad x (cheap) to a sublane/tile-friendly multiple.
    m_p = _round_up(M, 256) if M >= 256 else _round_up(M, 8)
    if m_p != M:
        x_c = jnp.pad(x_c, ((0, m_p - M), (0, 0)))
    tm = _pick_tile(m_p, (512, 256, 128, 64, 32, 16, 8))

    # N / K tiles: exact divisors (multiples of 128) or the full dim, so W and b
    # are never padded or copied.
    tn = _pick_tile(N, (512, 256, 128))
    tk = _pick_tile(K, (512, 256, 128))

    # Megacore (v7x) occupancy: make sure the (i, j) grid has >= 2 tiles when N
    # allows, otherwise one TensorCore idles.
    if (m_p // tm) * (N // tn) < 2 and tn % 256 == 0:
        tn //= 2

    grid = (m_p // tm, N // tn, K // tk)

    y_padded = pl.pallas_call(
        _sn_matmul_kernel,
        out_shape=jax.ShapeDtypeStruct((m_p, N), x.dtype),
        grid=grid,
        in_specs=[
            pl.BlockSpec((tm, tk), lambda i, j, k: (i, k)),        # x tile
            pl.BlockSpec((tn, tk), lambda i, j, k: (j, k)),        # W tile (Out, In)
            pl.BlockSpec((1, tn), lambda i, j, k: (0, j)),         # bias tile
            pl.BlockSpec(memory_space=pltpu.MemorySpace.SMEM),     # inv_sigma
        ],
        out_specs=pl.BlockSpec((tm, tn), lambda i, j, k: (i, j)),
        scratch_shapes=[pltpu.VMEM((tm, tn), jnp.float32)],
        compiler_params=pltpu.CompilerParams(
            dimension_semantics=("parallel", "parallel", "arbitrary"),
            vmem_limit_bytes=_VMEM_LIMIT,
        ),
    )(x_c, w_c, b_row, inv_sigma)

    y = y_padded[:M, :N]
    return y, u_new.reshape(N).astype(u.dtype)


# ---------------------------------------------------------------------------
# Pure-JAX reference mirroring torch spectral_norm forward (training mode).
# ---------------------------------------------------------------------------
def _reference(x, w, b, u):
    v = jnp.einsum("o,oi->i", u, w, precision=lax.Precision.HIGHEST)
    v = v / jnp.maximum(jnp.linalg.norm(v), EPS)
    wv = jnp.einsum("oi,i->o", w, v, precision=lax.Precision.HIGHEST)
    u_new = wv / jnp.maximum(jnp.linalg.norm(wv), EPS)
    sigma = jnp.dot(u_new, wv)
    y = jnp.einsum("bi,oi->bo", x, w, precision=lax.Precision.HIGHEST) / sigma + b
    return y, u_new


def _run_case(name, batch, in_features, out_features, compute_dtype, rtol, atol):
    key = jax.random.PRNGKey(0)
    kx, kw, kb, ku = jax.random.split(key, 4)
    bound = float(in_features) ** -0.5

    x = jax.random.normal(kx, (batch, in_features), jnp.float32)
    w = jax.random.uniform(kw, (out_features, in_features), jnp.float32, -bound, bound)
    b = jax.random.uniform(kb, (out_features,), jnp.float32, -bound, bound)
    u0 = jax.random.normal(ku, (out_features,), jnp.float32)
    u0 = u0 / jnp.maximum(jnp.linalg.norm(u0), EPS)

    y, u_new = spectral_norm_linear(x, w, b, u0, compute_dtype=compute_dtype)
    jax.block_until_ready((y, u_new))

    y_ref, u_ref = _reference(x, w, b, u0)
    assert y.shape == (batch, out_features)
    assert jnp.allclose(y, y_ref, rtol=rtol, atol=atol), f"{name}: y mismatch vs reference"
    assert jnp.allclose(u_new, u_ref, rtol=5e-3, atol=5e-3), f"{name}: u mismatch vs reference"


if __name__ == "__main__":
    # Small shapes matching the module spec, f32 end-to-end.
    _run_case("small_f32", batch=8, in_features=32, out_features=16,
              compute_dtype=None, rtol=5e-3, atol=5e-3)
    # Moderate shapes exercising the full (i, j, k) grid with bf16 MXU tiles.
    _run_case("tiled_bf16", batch=256, in_features=1024, out_features=512,
              compute_dtype=jnp.bfloat16, rtol=3e-2, atol=3e-2)
    print("KERNEL_OK")
</pallas_src>

<mosaic_0001>
module attributes {stable_mosaic.version = 11 : i64} {
  func.func @_power_iteration_kernel(%arg0: i32, %arg1: memref<1x16xf32, #tpu.memory_space<vmem>>, %arg2: memref<16x32xf32, #tpu.memory_space<vmem>>, %arg3: memref<1x1xf32, #tpu.memory_space<vmem>>, %arg4: memref<1x16xf32, #tpu.memory_space<vmem>>, %arg5: memref<1x16xf32, #tpu.memory_space<vmem>>, %arg6: memref<1x1xf32, #tpu.memory_space<vmem>>) attributes {dimension_semantics = [#tpu.dimension_semantics<arbitrary>], iteration_bounds = array<i64: 1>, scalar_prefetch = 0 : i64, scratch_operands = 2 : i64, tpu.core_type = #tpu.core_type<tc>, window_params = [{pipeline_mode = #tpu.pipeline_mode<synchronous>, transform_indices = @transform_0, window_bounds = array<i64: 1, 16>}, {transform_indices = @transform_1, window_bounds = array<i64: 16, 32>}, {pipeline_mode = #tpu.pipeline_mode<synchronous>, transform_indices = @transform_2, window_bounds = array<i64: 1, 1>}, {pipeline_mode = #tpu.pipeline_mode<synchronous>, transform_indices = @transform_3, window_bounds = array<i64: 1, 16>}]} {
    %c0_i32 = arith.constant 0 : i32
    %0 = arith.cmpi eq, %arg0, %c0_i32 : i32
    %1 = arith.extui %0 : i1 to i32
    %c0_i32_0 = arith.constant 0 : i32
    %2 = arith.cmpi ne, %1, %c0_i32_0 : i32
    scf.if %2 {
      %cst_16 = arith.constant 0.000000e+00 : f32
      %22 = vector.broadcast %cst_16 : f32 to vector<1x16xf32>
      %c0_17 = arith.constant 0 : index
      %c0_18 = arith.constant 0 : index
      %23 = vector.load %arg5[%c0_17, %c0_18] : memref<1x16xf32, #tpu.memory_space<vmem>>, vector<1x16xf32>
      tpu.vector_store %arg5[%c0_17, %c0_18], %22 {strides = array<i32>} : memref<1x16xf32, #tpu.memory_space<vmem>>, vector<1x16xf32>,
      %cst_19 = arith.constant 0.000000e+00 : f32
      %24 = vector.broadcast %cst_19 : f32 to vector<1x1xf32>
      %c0_20 = arith.constant 0 : index
      %c0_21 = arith.constant 0 : index
      %25 = vector.load %arg6[%c0_20, %c0_21] : memref<1x1xf32, #tpu.memory_space<vmem>>, vector<1x1xf32>
      tpu.vector_store %arg6[%c0_20, %c0_21], %24 {strides = array<i32>} : memref<1x1xf32, #tpu.memory_space<vmem>>, vector<1x1xf32>,
    } else {
    }
    %c0 = arith.constant 0 : index
    %c0_1 = arith.constant 0 : index
    %3 = vector.load %arg2[%c0, %c0_1] : memref<16x32xf32, #tpu.memory_space<vmem>>, vector<16x32xf32>
    %c0_2 = arith.constant 0 : index
    %c0_3 = arith.constant 0 : index
    %4 = vector.load %arg1[%c0_2, %c0_3] : memref<1x16xf32, #tpu.memory_space<vmem>>, vector<1x16xf32>
    %cst = arith.constant dense<0.000000e+00> : vector<1x32xf32>
    %5 = tpu.matmul %4, %3, %cst {dimension_numbers = #tpu.dot_dimension_numbers<[1], [0], [0], [1], [0, 0, 1, 1], [], []>} : vector<1x16xf32>, vector<16x32xf32>, vector<1x32xf32> -> vector<1x32xf32>
    %c0_4 = arith.constant 0 : index
    %c0_5 = arith.constant 0 : index
    %6 = vector.load %arg6[%c0_4, %c0_5] : memref<1x1xf32, #tpu.memory_space<vmem>>, vector<1x1xf32>
    %7 = arith.mulf %5, %5 : vector<1x32xf32>
    %8 = vector.shape_cast %7 : vector<1x32xf32> to vector<1x1x32xf32>
    %cst_6 = arith.constant dense<0.000000e+00> : vector<1xf32>
    %9 = vector.multi_reduction <add>, %8, %cst_6 [1, 2] : vector<1x1x32xf32> to vector<1xf32>
    %10 = vector.shape_cast %9 : vector<1xf32> to vector<1x1x1xf32>
    %11 = vector.extract %10[0, 0, 0] : f32 from vector<1x1x1xf32>
    %12 = vector.broadcast %11 : f32 to vector<1x1xf32>
    %13 = arith.addf %6, %12 : vector<1x1xf32>
    %c0_7 = arith.constant 0 : index
    %c0_8 = arith.constant 0 : index
    %14 = vector.load %arg6[%c0_7, %c0_8] : memref<1x1xf32, #tpu.memory_space<vmem>>, vector<1x1xf32>
    tpu.vector_store %arg6[%c0_7, %c0_8], %13 {strides = array<i32>} : memref<1x1xf32, #tpu.memory_space<vmem>>, vector<1x1xf32>,
    %c0_9 = arith.constant 0 : index
    %c0_10 = arith.constant 0 : index
    %15 = vector.load %arg5[%c0_9, %c0_10] : memref<1x16xf32, #tpu.memory_space<vmem>>, vector<1x16xf32>
    %cst_11 = arith.constant dense<0.000000e+00> : vector<1x16xf32>
    %16 = tpu.matmul %5, %3, %cst_11 {dimension_numbers = #tpu.dot_dimension_numbers<[1], [1], [0], [0], [0, 0, 1, 0], [], []>} : vector<1x32xf32>, vector<16x32xf32>, vector<1x16xf32> -> vector<1x16xf32>
    %17 = arith.addf %15, %16 : vector<1x16xf32>
    %c0_12 = arith.constant 0 : index
    %c0_13 = arith.constant 0 : index
    %18 = vector.load %arg5[%c0_12, %c0_13] : memref<1x16xf32, #tpu.memory_space<vmem>>, vector<1x16xf32>
    tpu.vector_store %arg5[%c0_12, %c0_13], %17 {strides = array<i32>} : memref<1x16xf32, #tpu.memory_space<vmem>>, vector<1x16xf32>,
    %c0_i32_14 = arith.constant 0 : i32
    %19 = arith.cmpi eq, %arg0, %c0_i32_14 : i32
    %20 = arith.extui %19 : i1 to i32
    %c0_i32_15 = arith.constant 0 : i32
    %21 = arith.cmpi ne, %20, %c0_i32_15 : i32
    scf.if %21 {
      %c0_16 = arith.constant 0 : index
      %c0_17 = arith.constant 0 : index
      %22 = vector.load %arg5[%c0_16, %c0_17] : memref<1x16xf32, #tpu.memory_space<vmem>>, vector<1x16xf32>
      %23 = arith.mulf %22, %22 : vector<1x16xf32>
      %24 = vector.shape_cast %23 : vector<1x16xf32> to vector<1x1x16xf32>
      %cst_18 = arith.constant dense<0.000000e+00> : vector<1xf32>
      %25 = vector.multi_reduction <add>, %24, %cst_18 [1, 2] : vector<1x1x16xf32> to vector<1xf32>
      %26 = vector.shape_cast %25 : vector<1xf32> to vector<1x1x1xf32>
      %27 = vector.extract %26[0, 0, 0] : f32 from vector<1x1x1xf32>
      %28 = vector.broadcast %27 : f32 to vector<1x1xf32>
      %cst_19 = arith.constant 1.000000e-24 : f32
      %29 = vector.broadcast %cst_19 : f32 to vector<1x1xf32>
      %30 = arith.maximumf %28, %29 : vector<1x1xf32>
      %31 = math.sqrt %30 : vector<1x1xf32>
      %c0_20 = arith.constant 0 : index
      %c0_21 = arith.constant 0 : index
      %32 = vector.load %arg6[%c0_20, %c0_21] : memref<1x1xf32, #tpu.memory_space<vmem>>, vector<1x1xf32>
      %cst_22 = arith.constant 1.000000e-24 : f32
      %33 = vector.broadcast %cst_22 : f32 to vector<1x1xf32>
      %34 = arith.maximumf %32, %33 : vector<1x1xf32>
      %35 = math.sqrt %34 : vector<1x1xf32>
      %36 = vector.broadcast %31 : vector<1x1xf32> to vector<1x16xf32>
      %37 = arith.divf %22, %36 : vector<1x16xf32>
      %c0_23 = arith.constant 0 : index
      %c0_24 = arith.constant 0 : index
      %38 = vector.load %arg4[%c0_23, %c0_24] : memref<1x16xf32, #tpu.memory_space<vmem>>, vector<1x16xf32>
      tpu.vector_store %arg4[%c0_23, %c0_24], %37 {strides = array<i32>} : memref<1x16xf32, #tpu.memory_space<vmem>>, vector<1x16xf32>,
      %39 = arith.divf %35, %31 : vector<1x1xf32>
      %c0_25 = arith.constant 0 : index
      %c0_26 = arith.constant 0 : index
      %40 = vector.load %arg3[%c0_25, %c0_26] : memref<1x1xf32, #tpu.memory_space<vmem>>, vector<1x1xf32>
      tpu.vector_store %arg3[%c0_25, %c0_26], %39 {strides = array<i32>} : memref<1x1xf32, #tpu.memory_space<vmem>>, vector<1x1xf32>,
    } else {
    }
    return
  }
  func.func @transform_0(%arg0: i32) -> (i32, i32) {
    %c0_i32 = arith.constant 0 : i32
    %c0_i32_0 = arith.constant 0 : i32
    %c0_i32_1 = arith.constant 0 : i32
    return %c0_i32, %c0_i32_0 : i32, i32
  }
  func.func @transform_1(%arg0: i32) -> (i32, i32) {
    %c0_i32 = arith.constant 0 : i32
    %c0_i32_0 = arith.constant 0 : i32
    return %c0_i32, %arg0 : i32, i32
  }
  func.func @transform_2(%arg0: i32) -> (i32, i32) {
    %c0_i32 = arith.constant 0 : i32
    %c0_i32_0 = arith.constant 0 : i32
    %c0_i32_1 = arith.constant 0 : i32
    return %c0_i32, %c0_i32_0 : i32, i32
  }
  func.func @transform_3(%arg0: i32) -> (i32, i32) {
    %c0_i32 = arith.constant 0 : i32
    %c0_i32_0 = arith.constant 0 : i32
    %c0_i32_1 = arith.constant 0 : i32
    return %c0_i32, %c0_i32_0 : i32, i32
  }
}

</mosaic_0001>

<llo_original>
// kernel: tpu_custom_call.1
$region0: #{tpu_custom_call.1}
  #allocation0 [shape = 'u32[]', space=smem, size = 0x4, offset = 0x4, fixed_abs, tag = 'smem constant byte address 0x4 - core index']
  #allocation1 [shape = 'u32[144,128]{1,0:T(1,128)}', space=vmem, size = 0x12000, scoped, tag = 'internal scratch']
  #allocation2 [shape = 'f32[1,16]{1,0:T(1,128)}', space=vmem, size = 0x200, scoped, tag = 'scratch operand']
  #allocation3 [shape = 'f32[1,1]{1,0:T(1,128)}', space=vmem, size = 0x200, scoped, tag = 'scratch operand']
  %s0 = inlined_call_operand.hbm [shape: f32[1,16], index: 0, kind: input, shape index: {}]
  %s1 = inlined_call_operand.hbm [shape: f32[16,32], index: 1, kind: input, shape index: {}]
  %s2 = inlined_call_operand.hbm [shape: f32[1,1], index: 2, kind: output, shape index: {0}]
  %s3 = inlined_call_operand.hbm [shape: f32[1,16], index: 3, kind: output, shape index: {1}]
  %4 = xla_tuple %s2, %s3
  %s5 = sld [smem:[#allocation0]]
  $region42: #{tpu_custom_call.1} parent=0
    _
  %s7 = ssub.s32 1, %s5
  %s8 = scalar_select 0, %s7, %s5
  $region1: #{tpu_custom_call.1} parent=0
    #allocation4 [shape = 'u8[512]{0}', space=vmem, size = 0x400, scoped, tag = 'input window, operand 0, single buffered']
    #allocation5 [shape = 's32[1]{0}', space=sflag, size = 0x4, scoped, tag = 'scoped memory for tpu_custom_call.1']
    #allocation6 [shape = 's32[1]{0}', space=sflag, size = 0x4, scoped, tag = 'scoped memory for tpu_custom_call.1']
    #allocation7 [shape = 'u8[8192]{0}', space=vmem, size = 0x2000, scoped, tag = 'input window, operand 1, single buffered']
    #allocation8 [shape = 's32[1]{0}', space=sflag, size = 0x4, scoped, tag = 'scoped memory for tpu_custom_call.1']
    #allocation9 [shape = 'u8[512]{0}', space=vmem, size = 0x400, scoped, tag = 'output window, operand 0, single buffered']
    #allocation10 [shape = 'u8[512]{0}', space=vmem, size = 0x400, scoped, tag = 'output window, operand 1, single buffered']
    #allocation11 [shape = 's32[1]{0}', space=sflag, size = 0x4, scoped, tag = 'scoped memory for tpu_custom_call.1']
    %9 = vsyncpa [#allocation5], 0
    %10 = vsyncpa [#allocation8], 0
    %11 = vsyncpa [#allocation6], 0
    %12 = vsyncpa [#allocation11], 0
    // Predicated region
    $region2: #{tpu_custom_call.1} parent=1 // pred_check
      _
    $region3: #{tpu_custom_call.1} parent=1 // pred_check_branch
      %14 = sbr.rel (0) target = $region5
    $region4: #{tpu_custom_call.1} parent=1 // pred_region
      %s16 = ssub.s32 16, 16
      %17 = vsyncadd [#allocation5], %s16
      %s19 = sshll.u32 [#allocation4], 4
      %s20 = int_to_ptr.vmem [resolvable:$true] %s19
      %22 = dma.hbm_to_vmem [thread:$0]  %s0, 16, %s20, [#allocation5]
    $region5: #{tpu_custom_call.1} parent=1 // pred_fallthru
      _
    // Predicated region
    $region6: #{tpu_custom_call.1} parent=1 // pred_check
      _
    $region7: #{tpu_custom_call.1} parent=1 // pred_check_branch
      %24 = sbr.rel (0) target = $region9
    $region8: #{tpu_custom_call.1} parent=1 // pred_region
      %s26 = ssub.s32 256, 256
      %27 = vsyncadd [#allocation8], %s26
      %s28 = sshll.u32 [#allocation7], 4
      %s29 = int_to_ptr.vmem [resolvable:$true] %s28
      %34 = dma.hbm_to_vmem [thread:$0]  %s1, 256, %s29, [#allocation8], 128, 128, 8
    $region9: #{tpu_custom_call.1} parent=1 // pred_fallthru
      _
    // Predicated region
    $region10: #{tpu_custom_call.1} parent=1 // pred_check
      _
    $region11: #{tpu_custom_call.1} parent=1 // pred_check_branch
      %36 = sbr.rel (0) target = $region13
    $region12: #{tpu_custom_call.1} parent=1 // pred_region
      %37 = dma.done [#allocation5], 16
    $region13: #{tpu_custom_call.1} parent=1 // pred_fallthru
      _
    // Predicated region
    $region14: #{tpu_custom_call.1} parent=1 // pred_check
      _
    $region15: #{tpu_custom_call.1} parent=1 // pred_check_branch
      %39 = sbr.rel (0) target = $region17
    $region16: #{tpu_custom_call.1} parent=1 // pred_region
      %40 = dma.done [#allocation8], 256
    $region17: #{tpu_custom_call.1} parent=1 // pred_fallthru
      _
    %p41 = scmp.eq.s32.totalorder 0, 0
    // Predicated region
    $region18: #{tpu_custom_call.1} parent=1 // pred_check
      %p42 = pneg %p41
    $region19: #{tpu_custom_call.1} parent=1 // pred_check_branch
      %44 = sbr.rel (%p42) target = $region21
    $region20: #{tpu_custom_call.1} parent=1 // pred_region
      %vm45 = vcmask 122880
      %46 = vst.msk [vmem:[#allocation2] sm:$0x1] %vm45, 0.0
      %vm47 = vcmask 0
      %48 = vst.msk [vmem:[#allocation3] sm:$0x1] %vm47, 0.0
    $region21: #{tpu_custom_call.1} parent=1 // pred_fallthru
      _
    %v49 = vld [vmem:[#allocation7] sm:$0xff]
    %v50 = vld [vmem:[#allocation7 + $0x8] sm:$0xff]
    %v51 = vld [vmem:[#allocation4] sm:$0x1]
    %vm52 = vcmask 130048
    %v54 = vsel %vm52, %v51, 0
    %56 = vmatprep.subr.mxu0 0.0
    %57 = vmatpush1.msra.mxu0 %v49
    %58 = vmatprep.subr.mxu0 0.0
    %59 = vmatpush1.msra.mxu0 %v50
    %60 = vmatprep.subr.mxu0 0.0
    %61 = vmatpush1.msra.mxu0 0.0
    %62 = vmatprep.subr.mxu0 0.0
    %63 = vmatpush1.msra.mxu0 0.0
    %64 = vmatprep.subr.mxu0 0.0
    %65 = vmatpush1.msra.mxu0 0.0
    %66 = vmatprep.subr.mxu0 0.0
    %67 = vmatpush1.msra.mxu0 0.0
    %68 = vmatprep.subr.mxu0 0.0
    %69 = vmatpush1.msra.mxu0 0.0
    %70 = vmatprep.subr.mxu0 0.0
    %71 = vmatpush1.msra.mxu0 0.0
    %72 = vmatprep.subr.mxu0 0.0
    %73 = vmatpush1.msra.mxu0 0.0
    %74 = vmatprep.subr.mxu0 0.0
    %75 = vmatpush1.msra.mxu0 0.0
    %76 = vmatprep.subr.mxu0 0.0
    %77 = vmatpush1.msra.mxu0 0.0
    %78 = vmatprep.subr.mxu0 0.0
    %79 = vmatpush1.msra.mxu0 0.0
    %80 = vmatprep.subr.mxu0 0.0
    %81 = vmatpush1.msra.mxu0 0.0
    %82 = vmatprep.subr.mxu0 0.0
    %83 = vmatpush1.msra.mxu0 0.0
    %84 = vmatprep.subr.mxu0 0.0
    %85 = vmatpush1.msra.mxu0 0.0
    %86 = vmatprep.subr.mxu0 0.0
    %87 = vmatpush1.msra.mxu0 0.0
    %88 = vmatprep.subr.mxu0 0.0
    %89 = vmatpush1.msra.mxu0 0.0
    %90 = vmatprep.subr.mxu0 0.0
    %91 = vmatpush1.msra.mxu0 0.0
    %92 = vmatprep.subr.mxu0 0.0
    %93 = vmatpush1.msra.mxu0 0.0
    %94 = vmatprep.subr.mxu0 0.0
    %95 = vmatpush1.msra.mxu0 0.0
    %96 = vmatprep.subr.mxu0 0.0
    %97 = vmatpush1.msra.mxu0 0.0
    %98 = vmatprep.subr.mxu0 0.0
    %99 = vmatpush1.msra.mxu0 0.0
    %100 = vmatprep.subr.mxu0 0.0
    %101 = vmatpush1.msra.mxu0 0.0
    %102 = vmatprep.subr.mxu0 0.0
    %103 = vmatpush1.msra.mxu0 0.0
    %104 = vmatprep.subr.mxu0 0.0
    %105 = vmatpush1.msra.mxu0 0.0
    %106 = vmatprep.subr.mxu0 0.0
    %107 = vmatpush1.msra.mxu0 0.0
    %108 = vmatprep.subr.mxu0 0.0
    %109 = vmatpush1.msra.mxu0 0.0
    %110 = vmatprep.subr.mxu0 0.0
    %111 = vmatpush1.msra.mxu0 0.0
    %112 = vmatprep.subr.mxu0 0.0
    %113 = vmatpush1.msra.mxu0 0.0
    %114 = vmatprep.subr.mxu0 0.0
    %115 = vmatpush1.msra.mxu0 0.0
    %116 = vmatprep.subr.mxu0 0.0
    %117 = vmatpush1.msra.mxu0 0.0
    %118 = vmatprep.subr.mxu0 0.0
    %119 = vmatpush1.msra.mxu0 0.0
    %120 = vmatprep.mubr.f32.mxu0 0.0
    %121 = vmatmul.mubr.f32.gmra.mrb[0].mxu0 %v54
    %v122 = vpop.f32.mrb[0].mxu0
    %v123 = vadd.f32 0.0, %v122
    %v124 = vpop.f32.mrb[0].mxu0
    %125 = vdwg.mxu0
    %v126 = vld [vmem:[#allocation3] sm:$0x1]
    %v127 = vmul.f32 %v123, %v123
    %vm128 = vcmask 253952
    %v129 = vsel %vm128, %v127, 0.0
    %130 = vadd.xlane.f32.xlu0 %v129
    %v131 = vpop.xlane.xlu0 %130
    %v132 = vrot.slane %v131, 4
    %v133 = vadd.f32 %v131, %v132
    %v134 = vrot.slane %v133, 2
    %v135 = vadd.f32 %v133, %v134
    %v136 = vrot.slane %v135, 1
    %v137 = vadd.f32 %v135, %v136
    %s138 = vtos %v137
    %v139 = vstv %s138
    %v140 = vadd.f32 %v126, %v139
    %vm141 = vcmask 0
    %142 = vst.msk [vmem:[#allocation3] sm:$0x1] %vm141, %v140
    %v143 = vld [vmem:[#allocation2] sm:$0x1]
    %vm144 = vcmask 261120
    %v146 = vsel %vm144, %v123, 0
    %v149 = vsel %vm144, %v49, 0
    %v152 = vsel %vm144, %v50, 0
    %154 = vmatprep.subr.mxu0 0.0
    %155 = vmatpush1.xpose.msra.mxu0 %v149
    %156 = vmatprep.subr.mxu0 0.0
    %157 = vmatpush1.xpose.msra.mxu0 %v152
    %158 = vmatprep.subr.mxu0 0.0
    %159 = vmatpush1.xpose.msra.mxu0 0.0
    %160 = vmatprep.subr.mxu0 0.0
    %161 = vmatpush1.xpose.msra.mxu0 0.0
    %162 = vmatprep.subr.mxu0 0.0
    %163 = vmatpush1.xpose.msra.mxu0 0.0
    %164 = vmatprep.subr.mxu0 0.0
    %165 = vmatpush1.xpose.msra.mxu0 0.0
    %166 = vmatprep.subr.mxu0 0.0
    %167 = vmatpush1.xpose.msra.mxu0 0.0
    %168 = vmatprep.subr.mxu0 0.0
    %169 = vmatpush1.xpose.msra.mxu0 0.0
    %170 = vmatprep.subr.mxu0 0.0
    %171 = vmatpush1.xpose.msra.mxu0 0.0
    %172 = vmatprep.subr.mxu0 0.0
    %173 = vmatpush1.xpose.msra.mxu0 0.0
    %174 = vmatprep.subr.mxu0 0.0
    %175 = vmatpush1.xpose.msra.mxu0 0.0
    %176 = vmatprep.subr.mxu0 0.0
    %177 = vmatpush1.xpose.msra.mxu0 0.0
    %178 = vmatprep.subr.mxu0 0.0
    %179 = vmatpush1.xpose.msra.mxu0 0.0
    %180 = vmatprep.subr.mxu0 0.0
    %181 = vmatpush1.xpose.msra.mxu0 0.0
    %182 = vmatprep.subr.mxu0 0.0
    %183 = vmatpush1.xpose.msra.mxu0 0.0
    %184 = vmatprep.subr.mxu0 0.0
    %185 = vmatpush1.xpose.msra.mxu0 0.0
    %186 = vmatprep.subr.mxu0 0.0
    %187 = vmatpush1.xpose.msra.mxu0 0.0
    %188 = vmatprep.subr.mxu0 0.0
    %189 = vmatpush1.xpose.msra.mxu0 0.0
    %190 = vmatprep.subr.mxu0 0.0
    %191 = vmatpush1.xpose.msra.mxu0 0.0
    %192 = vmatprep.subr.mxu0 0.0
    %193 = vmatpush1.xpose.msra.mxu0 0.0
    %194 = vmatprep.subr.mxu0 0.0
    %195 = vmatpush1.xpose.msra.mxu0 0.0
    %196 = vmatprep.subr.mxu0 0.0
    %197 = vmatpush1.xpose.msra.mxu0 0.0
    %198 = vmatprep.subr.mxu0 0.0
    %199 = vmatpush1.xpose.msra.mxu0 0.0
    %200 = vmatprep.subr.mxu0 0.0
    %201 = vmatpush1.xpose.msra.mxu0 0.0
    %202 = vmatprep.subr.mxu0 0.0
    %203 = vmatpush1.xpose.msra.mxu0 0.0
    %204 = vmatprep.subr.mxu0 0.0
    %205 = vmatpush1.xpose.msra.mxu0 0.0
    %206 = vmatprep.subr.mxu0 0.0
    %207 = vmatpush1.xpose.msra.mxu0 0.0
    %208 = vmatprep.subr.mxu0 0.0
    %209 = vmatpush1.xpose.msra.mxu0 0.0
    %210 = vmatprep.subr.mxu0 0.0
    %211 = vmatpush1.xpose.msra.mxu0 0.0
    %212 = vmatprep.subr.mxu0 0.0
    %213 = vmatpush1.xpose.msra.mxu0 0.0
    %214 = vmatprep.subr.mxu0 0.0
    %215 = vmatpush1.xpose.msra.mxu0 0.0
    %216 = vmatprep.subr.mxu0 0.0
    %217 = vmatpush1.xpose.msra.mxu0 0.0
    %218 = vmatprep.mubr.f32.mxu0 0.0
    %219 = vmatmul.mubr.f32.gmra.mrb[0].mxu0 %v146
    %v220 = vpop.f32.mrb[0].mxu0
    %v221 = vadd.f32 0.0, %v220
    %v222 = vpop.f32.mrb[0].mxu0
    %223 = vdwg.mxu0
    %v224 = vadd.f32 %v143, %v221
    %vm225 = vcmask 122880
    %226 = vst.msk [vmem:[#allocation2] sm:$0x1] %vm225, %v224
    // Predicated region
    $region22: #{tpu_custom_call.1} parent=1 // pred_check
      %p227 = pneg %p41
    $region23: #{tpu_custom_call.1} parent=1 // pred_check_branch
      %229 = sbr.rel (%p227) target = $region25
    $region24: #{tpu_custom_call.1} parent=1 // pred_region
      %v230 = vld [vmem:[#allocation2] sm:$0x1]
      %v231 = vmul.f32 %v230, %v230
      %v232 = vsel %vm225, %v231, 0.0
      %233 = vadd.xlane.f32.xlu0 %v232
      %v234 = vpop.xlane.xlu0 %233
      %v235 = vrot.slane %v234, 4
      %v236 = vadd.f32 %v234, %v235
      %v237 = vrot.slane %v236, 2
      %v238 = vadd.f32 %v236, %v237
      %v239 = vrot.slane %v238, 1
      %v240 = vadd.f32 %v238, %v239
      %s241 = vtos %v240
      %v242 = vstv %s241
      %v243 = vmax.f32 %v242, 1e-24
      %v244 = vrsqrt.pop %v243
      %v245 = vmul.f32 %v243, %v244
      %vm246 = vcmp.eq.f32.partialorder %v243, inf
      %v247 = vsel %vm246, %v243, %v245
      %vm248 = vcmp.eq.f32.partialorder %v243, 0.0
      %v249 = vand.u32 %v243, 2147483648
      %v250 = vsel %vm248, %v249, %v247
      %v251 = vld [vmem:[#allocation3] sm:$0x1]
      %v252 = vmax.f32 %v251, 1e-24
      %v253 = vrsqrt.pop %v252
      %v254 = vmul.f32 %v252, %v253
      %vm255 = vcmp.eq.f32.partialorder %v252, inf
      %v256 = vsel %vm255, %v252, %v254
      %vm257 = vcmp.eq.f32.partialorder %v252, 0.0
      %v258 = vand.u32 %v252, 2147483648
      %v259 = vsel %vm257, %v258, %v256
      %v260 = vrcp.pop %v250
      %v261 = vmul.f32 %v230, %v260
      %262 = vst.msk [vmem:[#allocation10] sm:$0x1] %vm225, %v261
      %v263 = vmul.f32 %v259, %v260
      %264 = vst.msk [vmem:[#allocation9] sm:$0x1] %vm141, %v263
    $region25: #{tpu_custom_call.1} parent=1 // pred_fallthru
      _
    // Predicated region
    $region26: #{tpu_custom_call.1} parent=1 // pred_check
      _
    $region27: #{tpu_custom_call.1} parent=1 // pred_check_branch
      %266 = sbr.rel (0) target = $region29
    $region28: #{tpu_custom_call.1} parent=1 // pred_region
      %s268 = ssub.s32 16, 16
      %269 = vsyncadd [#allocation6], %s268
      %s271 = sshll.u32 [#allocation9], 4
      %s272 = int_to_ptr.vmem [resolvable:$true] %s271
      %274 = dma.vmem_to_hbm [thread:$0]  %s272, 16, %s2, [#allocation6]
    $region29: #{tpu_custom_call.1} parent=1 // pred_fallthru
      _
    // Predicated region
    $region30: #{tpu_custom_call.1} parent=1 // pred_check
      _
    $region31: #{tpu_custom_call.1} parent=1 // pred_check_branch
      %276 = sbr.rel (0) target = $region33
    $region32: #{tpu_custom_call.1} parent=1 // pred_region
      %s278 = ssub.s32 16, 16
      %279 = vsyncadd [#allocation11], %s278
      %s281 = sshll.u32 [#allocation10], 4
      %s282 = int_to_ptr.vmem [resolvable:$true] %s281
      %284 = dma.vmem_to_hbm [thread:$0]  %s282, 16, %s3, [#allocation11]
    $region33: #{tpu_custom_call.1} parent=1 // pred_fallthru
      _
    // Predicated region
    $region34: #{tpu_custom_call.1} parent=1 // pred_check
      _
    $region35: #{tpu_custom_call.1} parent=1 // pred_check_branch
      %286 = sbr.rel (0) target = $region37
    $region36: #{tpu_custom_call.1} parent=1 // pred_region
      %287 = dma.done [#allocation6], 16
    $region37: #{tpu_custom_call.1} parent=1 // pred_fallthru
      _
    // Predicated region
    $region38: #{tpu_custom_call.1} parent=1 // pred_check
      _
    $region39: #{tpu_custom_call.1} parent=1 // pred_check_branch
      %289 = sbr.rel (0) target = $region41
    $region40: #{tpu_custom_call.1} parent=1 // pred_region
      %290 = dma.done [#allocation11], 16
    $region41: #{tpu_custom_call.1} parent=1 // pred_fallthru
      _
    %291 = vsyncpa [#allocation5], 1
    %292 = vsyncpa [#allocation8], 1
    %293 = vsyncpa [#allocation6], 1
    %294 = vsyncpa [#allocation11], 1

</llo_original>
